<compile_context>
chip_gen: v6e
topology: v6e:2x2x1
jax: 0.10.0
libtpu: 0.0.40
codegen_flags: <defaults>
</compile_context>

<pallas_src>
import jax
import jax.numpy as jnp
import numpy as np
from jax import lax
from jax.experimental import pallas as pl
from jax.experimental.pallas import tpu as pltpu

# ----- config (synthetic, mirrors model_config entries) ----------------------
F = 16          # number_of_features_per_node (node_encoder output channels)
G = 8           # number_of_global_features
HE = 32         # edge_mlp number_of_hidden_channels
DE = 16         # edge_mlp number_of_output_channels
HN = 32         # node_mlp number_of_hidden_channels
DN = 16         # node_mlp number_of_output_channels
LN_EPS = 1e-5
USE_ATTENTION = True

HF = HE * (2 if USE_ATTENTION else 1)    # fused hidden width  [edge | attn]
DF = DE * (2 if USE_ATTENTION else 1)    # fused pre-LN output width
CIN_E = 2 * F + G                        # edge MLP input width  (x_src | x_tgt | g)
CIN_N = F + DE + G                       # node MLP input width  (x | summed_edges | g)

EDGE_TILE = 256                          # target rows per edge tile (multiple of 8)
NODE_TILE = 256                          # target rows per node tile (multiple of 8)
VMEM_LIMIT = 32 * 1024 * 1024


def _pad_rows(n, target_tile):
    """Return (padded_n, tile): tile is a multiple of 8 and divides padded_n."""
    n8 = ((n + 7) // 8) * 8
    if n8 <= target_tile:
        return n8, n8
    npad = ((n + target_tile - 1) // target_tile) * target_tile
    return npad, target_tile


def _layer_norm(h, gamma, beta):
    mean = jnp.mean(h, axis=-1, keepdims=True)
    var = jnp.mean(jnp.square(h - mean), axis=-1, keepdims=True)
    return (h - mean) * lax.rsqrt(var + LN_EPS) * gamma + beta


# ----- EdgeModel kernel (grid over edge tiles) --------------------------------
def _make_edge_kernel(TE, E, E_pad):
    def edge_kernel(src_ref, tgt_ref, nb_ref,                      # SMEM (scalar prefetch)
                    x_ref, g_ref, w1_ref, w2_ref, w3_ref, vec_ref,  # VMEM inputs (resident)
                    out_ref,                                        # (TE, DE) output tile
                    cat_ref):                                       # (TE, CIN_E) scratch
        i = pl.program_id(0)
        base = i * TE

        # ---- gather [x[src] | x[tgt] | g[batch_ids[src]]] rows into the concat scratch ---
        def gather_row(r, carry):
            sid = src_ref[base + r]
            tid = tgt_ref[base + r]
            gid = nb_ref[sid]                                   # per-edge graph id, in-kernel
            cat_ref[pl.ds(r, 1), 0:F] = x_ref[pl.ds(sid, 1), :]
            cat_ref[pl.ds(r, 1), F:2 * F] = x_ref[pl.ds(tid, 1), :]
            cat_ref[pl.ds(r, 1), 2 * F:CIN_E] = g_ref[pl.ds(gid, 1), :]
            return carry

        lax.fori_loop(0, TE, gather_row, 0)

        # ---- fused edge+attention MLP: single K=CIN_E matmul, then two block-diag matmuls -
        vec = vec_ref[...]                                      # (5, HF): b1;b2;b3;gamma;beta
        b1 = vec[0:1, :]
        b2 = vec[1:2, :]
        b3 = vec[2:3, 0:DF]
        cat = cat_ref[...]                                      # (TE, CIN_E)
        h = jnp.maximum(jnp.dot(cat, w1_ref[...], preferred_element_type=jnp.float32) + b1, 0.0)
        h = jnp.maximum(jnp.dot(h, w2_ref[...], preferred_element_type=jnp.float32) + b2, 0.0)
        h = jnp.dot(h, w3_ref[...], preferred_element_type=jnp.float32) + b3   # (TE, DF)

        if USE_ATTENTION:
            edges = _layer_norm(h[:, 0:DE], vec[3:4, 0:DE], vec[4:5, 0:DE])
            attn = _layer_norm(h[:, DE:DF], vec[3:4, DE:DF], vec[4:5, DE:DF])
            edges = edges * jax.nn.sigmoid(attn)
        else:
            edges = _layer_norm(h, vec[3:4, 0:DE], vec[4:5, 0:DE])

        if E_pad != E:
            # zero padded edge rows so their scatter contribution vanishes downstream
            rows = base + lax.broadcasted_iota(jnp.int32, (TE, 1), 0)
            edges = jnp.where(rows < E, edges, 0.0)

        out_ref[...] = edges.astype(out_ref.dtype)

    return edge_kernel


# ----- NodeModel kernel (grid: node tiles x edge tiles, edge axis = reduction) -
def _make_node_kernel(TN, TE):
    def node_kernel(nb_ref,                                         # SMEM (scalar prefetch)
                    x_ref, e_ref, tgt_ref, g_ref,
                    w1_ref, w2_ref, w3_ref, vec_ref,
                    out_ref,
                    acc_ref, cat_ref):
        j = pl.program_id(0)
        k = pl.program_id(1)

        @pl.when(k == 0)
        def _():
            acc_ref[...] = jnp.zeros_like(acc_ref)

        # ---- scatter_add(edge_feats, tgt) : one-hot kept only here (MXU accumulate),
        #      bf16 operands (0/1 exact), f32 accumulation.
        cols = j * TN + lax.broadcasted_iota(jnp.int32, (TE, TN), 1)
        one_hot = (tgt_ref[...] == cols).astype(jnp.bfloat16)          # (TE, TN)
        e_blk = e_ref[...].astype(jnp.bfloat16)                        # (TE, DE)
        acc_ref[...] += lax.dot_general(one_hot, e_blk, (((0,), (0,)), ((), ())),
                                        preferred_element_type=jnp.float32)

        @pl.when(k == pl.num_programs(1) - 1)
        def _():
            base = j * TN
            cat_ref[:, 0:F] = x_ref[...]
            cat_ref[:, F:F + DE] = acc_ref[...]

            def gather_row(r, carry):
                gid = nb_ref[base + r]
                cat_ref[pl.ds(r, 1), F + DE:CIN_N] = g_ref[pl.ds(gid, 1), :]
                return carry

            lax.fori_loop(0, TN, gather_row, 0)

            vec = vec_ref[...]                                   # (5, HN)
            b1 = vec[0:1, :]
            b2 = vec[1:2, :]
            b3 = vec[2:3, 0:DN]
            cat = cat_ref[...]                                   # (TN, CIN_N)
            h = jnp.maximum(jnp.dot(cat, w1_ref[...], preferred_element_type=jnp.float32) + b1, 0.0)
            h = jnp.maximum(jnp.dot(h, w2_ref[...], preferred_element_type=jnp.float32) + b2, 0.0)
            h = jnp.dot(h, w3_ref[...], preferred_element_type=jnp.float32) + b3
            out_ref[...] = _layer_norm(h, vec[3:4, 0:DN], vec[4:5, 0:DN]).astype(out_ref.dtype)

    return node_kernel


# ----- wrapper -----------------------------------------------------------------
def pose_graph_prediction_layer(features_of_nodes, node_ids_for_edges, global_features,
                                batch_ids, packed_params):
    """Returns (updated_node_features, updated_edge_features, global_features)."""
    x = features_of_nodes.astype(jnp.float32)
    g = global_features.astype(jnp.float32)
    N = x.shape[0]
    E = node_ids_for_edges.shape[1]
    B = g.shape[0]

    N_pad, TN = _pad_rows(N, NODE_TILE)
    E_pad, TE = _pad_rows(E, EDGE_TILE)
    KN = N_pad // TN
    KE = E_pad // TE

    src = jnp.pad(node_ids_for_edges[0].astype(jnp.int32), (0, E_pad - E))
    tgt = jnp.pad(node_ids_for_edges[1].astype(jnp.int32), (0, E_pad - E))
    nb = jnp.pad(batch_ids.astype(jnp.int32), (0, N_pad - N))
    x_p = jnp.pad(x, ((0, N_pad - N), (0, 0)))
    tgt_col = tgt.reshape(E_pad, 1)                        # VMEM copy for the scatter one-hot

    we1, we2, we3, evec = packed_params["edge"]
    wn1, wn2, wn3, nvec = packed_params["node"]

    # ----------------------------- EdgeModel -----------------------------------
    edge_grid = pltpu.PrefetchScalarGridSpec(
        num_scalar_prefetch=3,                             # src, tgt, node batch ids -> SMEM
        grid=(KE,),
        in_specs=[
            pl.BlockSpec((N_pad, F), lambda i, *_: (0, 0)),    # x        (resident)
            pl.BlockSpec((B, G), lambda i, *_: (0, 0)),        # g        (resident)
            pl.BlockSpec((CIN_E, HF), lambda i, *_: (0, 0)),   # fused w1
            pl.BlockSpec((HF, HF), lambda i, *_: (0, 0)),      # fused w2 (block-diag)
            pl.BlockSpec((HF, DF), lambda i, *_: (0, 0)),      # fused w3 (block-diag)
            pl.BlockSpec((5, HF), lambda i, *_: (0, 0)),       # stacked b1;b2;b3;gamma;beta
        ],
        out_specs=pl.BlockSpec((TE, DE), lambda i, *_: (i, 0)),
        scratch_shapes=[pltpu.VMEM((TE, CIN_E), jnp.float32)],
    )
    edge_out = pl.pallas_call(
        _make_edge_kernel(TE, E, E_pad),
        out_shape=jax.ShapeDtypeStruct((E_pad, DE), jnp.float32),
        grid_spec=edge_grid,
        compiler_params=pltpu.CompilerParams(
            dimension_semantics=("parallel",),
            vmem_limit_bytes=VMEM_LIMIT,
        ),
    )(src, tgt, nb, x_p, g, we1, we2, we3, evec)

    # ----------------------------- NodeModel -----------------------------------
    node_grid = pltpu.PrefetchScalarGridSpec(
        num_scalar_prefetch=1,                             # node batch ids -> SMEM
        grid=(KN, KE),
        in_specs=[
            pl.BlockSpec((TN, F), lambda j, k, *_: (j, 0)),    # x tile
            pl.BlockSpec((TE, DE), lambda j, k, *_: (k, 0)),   # edge features tile
            pl.BlockSpec((TE, 1), lambda j, k, *_: (k, 0)),    # target ids (VMEM, for one-hot)
            pl.BlockSpec((B, G), lambda j, k, *_: (0, 0)),     # g (resident)
            pl.BlockSpec((CIN_N, HN), lambda j, k, *_: (0, 0)),
            pl.BlockSpec((HN, HN), lambda j, k, *_: (0, 0)),
            pl.BlockSpec((HN, DN), lambda j, k, *_: (0, 0)),
            pl.BlockSpec((5, HN), lambda j, k, *_: (0, 0)),
        ],
        out_specs=pl.BlockSpec((TN, DN), lambda j, k, *_: (j, 0)),
        scratch_shapes=[pltpu.VMEM((TN, DE), jnp.float32),     # scatter accumulator
                        pltpu.VMEM((TN, CIN_N), jnp.float32)], # concat scratch
    )
    node_out = pl.pallas_call(
        _make_node_kernel(TN, TE),
        out_shape=jax.ShapeDtypeStruct((N_pad, DN), jnp.float32),
        grid_spec=node_grid,
        compiler_params=pltpu.CompilerParams(
            dimension_semantics=("parallel", "arbitrary"),
            vmem_limit_bytes=VMEM_LIMIT,
        ),
    )(nb, x_p, edge_out, tgt_col, g, wn1, wn2, wn3, nvec)

    return node_out[:N], edge_out[:E], global_features


# ----- deterministic parameter init (kaiming_uniform-style, relu) --------------
def init_params(key):
    def lin(k, fan_in, fan_out):
        kw, kb = jax.random.split(k)
        wb = float(np.sqrt(6.0 / fan_in))        # kaiming_uniform, gain=sqrt(2) for relu
        bb = float(1.0 / np.sqrt(fan_in))        # torch Linear default bias init
        w = jax.random.uniform(kw, (fan_in, fan_out), jnp.float32, -wb, wb)   # stored (in, out)
        b = jax.random.uniform(kb, (1, fan_out), jnp.float32, -bb, bb)
        return w, b

    def mlp(k, cin, hidden, cout):
        k1, k2, k3 = jax.random.split(k, 3)
        w1, b1 = lin(k1, cin, hidden)
        w2, b2 = lin(k2, hidden, hidden)
        w3, b3 = lin(k3, hidden, cout)
        gamma = jnp.ones((1, cout), jnp.float32)
        beta = jnp.zeros((1, cout), jnp.float32)
        return (w1, b1, w2, b2, w3, b3, gamma, beta)

    ke, ka, kn = jax.random.split(key, 3)
    return {
        "edge": mlp(ke, CIN_E, HE, DE),
        "attn": mlp(ka, CIN_E, HE, DE),
        "node": mlp(kn, CIN_N, HN, DN),
    }


def _block_diag(a, b):
    z_tr = jnp.zeros((a.shape[0], b.shape[1]), a.dtype)
    z_bl = jnp.zeros((b.shape[0], a.shape[1]), a.dtype)
    return jnp.concatenate(
        [jnp.concatenate([a, z_tr], axis=1), jnp.concatenate([z_bl, b], axis=1)], axis=0)


def _pad_lanes(v, width):
    return jnp.pad(v, ((0, 0), (0, width - v.shape[1])))


def pack_params(params):
    """Pack raw per-MLP parameters into the fused / stacked kernel layout."""
    w1e, b1e, w2e, b2e, w3e, b3e, ge, be = params["edge"]
    if USE_ATTENTION:
        w1a, b1a, w2a, b2a, w3a, b3a, ga, ba = params["attn"]
        w1 = jnp.concatenate([w1e, w1a], axis=1)             # (CIN_E, 2*HE)
        w2 = _block_diag(w2e, w2a)                           # (2*HE, 2*HE)
        w3 = _block_diag(w3e, w3a)                           # (2*HE, 2*DE)
        b1 = jnp.concatenate([b1e, b1a], axis=1)
        b2 = jnp.concatenate([b2e, b2a], axis=1)
        b3 = jnp.concatenate([b3e, b3a], axis=1)
        gamma = jnp.concatenate([ge, ga], axis=1)
        beta = jnp.concatenate([be, ba], axis=1)
    else:
        w1, w2, w3 = w1e, w2e, w3e
        b1, b2, b3, gamma, beta = b1e, b2e, b3e, ge, be
    evec = jnp.concatenate([_pad_lanes(v, HF) for v in (b1, b2, b3, gamma, beta)], axis=0)

    w1n, b1n, w2n, b2n, w3n, b3n, gn, bn = params["node"]
    nvec = jnp.concatenate([_pad_lanes(v, HN) for v in (b1n, b2n, b3n, gn, bn)], axis=0)
    return {"edge": (w1, w2, w3, evec), "node": (w1n, w2n, w3n, nvec)}


# ----- pure-JAX reference for verification --------------------------------------
def reference(x, node_ids_for_edges, g, batch_ids, params, *, bf16_scatter=False):
    def mlp(h, p):
        w1, b1, w2, b2, w3, b3, gamma, beta = p
        h = jnp.maximum(h @ w1 + b1, 0.0)
        h = jnp.maximum(h @ w2 + b2, 0.0)
        h = h @ w3 + b3
        m = h.mean(-1, keepdims=True)
        v = ((h - m) ** 2).mean(-1, keepdims=True)
        return (h - m) / jnp.sqrt(v + LN_EPS) * gamma + beta

    src, tgt = node_ids_for_edges
    feats = jnp.concatenate([x[src], x[tgt], g[batch_ids[src]]], axis=1)
    e = mlp(feats, params["edge"])
    if USE_ATTENTION:
        e = e * jax.nn.sigmoid(mlp(feats, params["attn"]))
    e_s = e.astype(jnp.bfloat16).astype(jnp.float32) if bf16_scatter else e
    summed = jax.ops.segment_sum(e_s, tgt, num_segments=x.shape[0])
    nf = jnp.concatenate([x, summed, g[batch_ids]], axis=1)
    return mlp(nf, params["node"]), e


if __name__ == "__main__":
    key = jax.random.PRNGKey(0)
    k_x, k_g, k_s, k_t, k_p = jax.random.split(key, 5)

    N, E, B = 16, 24, 2
    x = jax.random.normal(k_x, (N, F), jnp.float32)
    g = jax.random.normal(k_g, (B, G), jnp.float32)

    # 12 edges inside graph 0 (nodes 0..7), 12 inside graph 1 (nodes 8..15)
    src0 = jax.random.randint(k_s, (E // 2,), 0, N // 2)
    tgt0 = jax.random.randint(k_t, (E // 2,), 0, N // 2)
    node_ids_for_edges = jnp.stack(
        [jnp.concatenate([src0, src0 + N // 2]),
         jnp.concatenate([tgt0, tgt0 + N // 2])]
    ).astype(jnp.int32)
    batch_ids = jnp.concatenate(
        [jnp.zeros(N // 2, jnp.int32), jnp.ones(N // 2, jnp.int32)])

    params = init_params(k_p)
    packed = pack_params(params)

    nodes_out, edges_out, g_out = pose_graph_prediction_layer(
        x, node_ids_for_edges, g, batch_ids, packed)
    jax.block_until_ready((nodes_out, edges_out, g_out))

    # exact f32 module semantics
    n_ref, e_ref = reference(x, node_ids_for_edges, g, batch_ids, params)
    # same semantics but with the scatter operand rounded to bf16 (kernel's scatter dtype)
    n_ref_bf16, _ = reference(x, node_ids_for_edges, g, batch_ids, params, bf16_scatter=True)

    assert np.allclose(np.asarray(edges_out), np.asarray(e_ref), atol=1e-3, rtol=1e-3)
    assert np.allclose(np.asarray(nodes_out), np.asarray(n_ref_bf16), atol=2e-3, rtol=2e-3)
    # bf16 scatter operand => slightly looser bound against the exact f32 reference
    assert np.allclose(np.asarray(nodes_out), np.asarray(n_ref), atol=3e-2, rtol=3e-2)
    assert np.array_equal(np.asarray(g_out), np.asarray(g))

    print("KERNEL_OK")
</pallas_src>

<mosaic_0001>
module attributes {stable_mosaic.version = 11 : i64} {
  func.func @edge_kernel(%arg0: i32, %arg1: memref<24xi32, #tpu.memory_space<smem>>, %arg2: memref<24xi32, #tpu.memory_space<smem>>, %arg3: memref<16xi32, #tpu.memory_space<smem>>, %arg4: memref<16x16xf32, #tpu.memory_space<vmem>>, %arg5: memref<2x8xf32, #tpu.memory_space<vmem>>, %arg6: memref<40x64xf32, #tpu.memory_space<vmem>>, %arg7: memref<64x64xf32, #tpu.memory_space<vmem>>, %arg8: memref<64x32xf32, #tpu.memory_space<vmem>>, %arg9: memref<5x64xf32, #tpu.memory_space<vmem>>, %arg10: memref<24x16xf32, #tpu.memory_space<vmem>>, %arg11: memref<24x40xf32, #tpu.memory_space<vmem>>) attributes {dimension_semantics = [#tpu.dimension_semantics<parallel>], iteration_bounds = array<i64: 1>, scalar_prefetch = 3 : i64, scratch_operands = 1 : i64, tpu.core_type = #tpu.core_type<tc>, window_params = [{pipeline_mode = #tpu.pipeline_mode<synchronous>, transform_indices = @transform_0, window_bounds = array<i64: 16, 16>}, {pipeline_mode = #tpu.pipeline_mode<synchronous>, transform_indices = @transform_1, window_bounds = array<i64: 2, 8>}, {pipeline_mode = #tpu.pipeline_mode<synchronous>, transform_indices = @transform_2, window_bounds = array<i64: 40, 64>}, {pipeline_mode = #tpu.pipeline_mode<synchronous>, transform_indices = @transform_3, window_bounds = array<i64: 64, 64>}, {pipeline_mode = #tpu.pipeline_mode<synchronous>, transform_indices = @transform_4, window_bounds = array<i64: 64, 32>}, {pipeline_mode = #tpu.pipeline_mode<synchronous>, transform_indices = @transform_5, window_bounds = array<i64: 5, 64>}, {transform_indices = @transform_6, window_bounds = array<i64: 24, 16>}]} {
    %c24_i32 = arith.constant 24 : i32
    %0 = arith.muli %arg0, %c24_i32 : i32
    %c0_i32 = arith.constant 0 : i32
    %c24_i32_0 = arith.constant 24 : i32
    %1 = arith.addi %c0_i32, %c24_i32_0 : i32
    %c1_i32 = arith.constant 1 : i32
    scf.for %arg12 = %c0_i32 to %1 step %c1_i32  : i32 {
      %80 = arith.addi %0, %arg12 : i32
      %81 = arith.index_cast %80 : i32 to index
      %82 = memref.load %arg1[%81] : memref<24xi32, #tpu.memory_space<smem>>
      %83 = arith.addi %0, %arg12 : i32
      %84 = arith.index_cast %83 : i32 to index
      %85 = memref.load %arg2[%84] : memref<24xi32, #tpu.memory_space<smem>>
      %86 = arith.index_cast %82 : i32 to index
      %87 = memref.load %arg3[%86] : memref<16xi32, #tpu.memory_space<smem>>
      %88 = arith.index_cast %82 : i32 to index
      %c0_28 = arith.constant 0 : index
      %89 = vector.load %arg4[%88, %c0_28] : memref<16x16xf32, #tpu.memory_space<vmem>>, vector<1x16xf32>
      %90 = arith.index_cast %arg12 : i32 to index
      %c0_29 = arith.constant 0 : index
      %91 = vector.load %arg11[%90, %c0_29] : memref<24x40xf32, #tpu.memory_space<vmem>>, vector<1x16xf32>
      tpu.vector_store %arg11[%90, %c0_29], %89 {strides = array<i32>} : memref<24x40xf32, #tpu.memory_space<vmem>>, vector<1x16xf32>,
      %92 = arith.index_cast %85 : i32 to index
      %c0_30 = arith.constant 0 : index
      %93 = vector.load %arg4[%92, %c0_30] : memref<16x16xf32, #tpu.memory_space<vmem>>, vector<1x16xf32>
      %94 = arith.index_cast %arg12 : i32 to index
      %c16 = arith.constant 16 : index
      %95 = vector.load %arg11[%94, %c16] : memref<24x40xf32, #tpu.memory_space<vmem>>, vector<1x16xf32>
      tpu.vector_store %arg11[%94, %c16], %93 {strides = array<i32>} : memref<24x40xf32, #tpu.memory_space<vmem>>, vector<1x16xf32>,
      %96 = arith.index_cast %87 : i32 to index
      %c0_31 = arith.constant 0 : index
      %97 = vector.load %arg5[%96, %c0_31] : memref<2x8xf32, #tpu.memory_space<vmem>>, vector<1x8xf32>
      %98 = arith.index_cast %arg12 : i32 to index
      %c32 = arith.constant 32 : index
      %99 = vector.load %arg11[%98, %c32] : memref<24x40xf32, #tpu.memory_space<vmem>>, vector<1x8xf32>
      tpu.vector_store %arg11[%98, %c32], %97 {strides = array<i32>} : memref<24x40xf32, #tpu.memory_space<vmem>>, vector<1x8xf32>,
    }
    %c24_i32_1 = arith.constant 24 : i32
    %c0 = arith.constant 0 : index
    %c0_2 = arith.constant 0 : index
    %2 = vector.load %arg9[%c0, %c0_2] : memref<5x64xf32, #tpu.memory_space<vmem>>, vector<5x64xf32>
    %3 = vector.extract_strided_slice %2 {offsets = [0, 0], sizes = [1, 64], strides = [1, 1]} : vector<5x64xf32> to vector<1x64xf32>
    %4 = vector.extract_strided_slice %2 {offsets = [1, 0], sizes = [1, 64], strides = [1, 1]} : vector<5x64xf32> to vector<1x64xf32>
    %5 = vector.extract_strided_slice %2 {offsets = [2, 0], sizes = [1, 32], strides = [1, 1]} : vector<5x64xf32> to vector<1x32xf32>
    %c0_3 = arith.constant 0 : index
    %c0_4 = arith.constant 0 : index
    %6 = vector.load %arg11[%c0_3, %c0_4] : memref<24x40xf32, #tpu.memory_space<vmem>>, vector<24x40xf32>
    %c0_5 = arith.constant 0 : index
    %c0_6 = arith.constant 0 : index
    %7 = vector.load %arg6[%c0_5, %c0_6] : memref<40x64xf32, #tpu.memory_space<vmem>>, vector<40x64xf32>
    %cst = arith.constant dense<0.000000e+00> : vector<24x64xf32>
    %8 = tpu.matmul %6, %7, %cst {dimension_numbers = #tpu.dot_dimension_numbers<[1], [0], [0], [1], [0, 0, 1, 1], [], []>} : vector<24x40xf32>, vector<40x64xf32>, vector<24x64xf32> -> vector<24x64xf32>
    %9 = vector.broadcast %3 : vector<1x64xf32> to vector<24x64xf32>
    %10 = arith.addf %8, %9 : vector<24x64xf32>
    %cst_7 = arith.constant 0.000000e+00 : f32
    %11 = vector.broadcast %cst_7 : f32 to vector<24x64xf32>
    %12 = arith.maximumf %10, %11 : vector<24x64xf32>
    %c0_8 = arith.constant 0 : index
    %c0_9 = arith.constant 0 : index
    %13 = vector.load %arg7[%c0_8, %c0_9] : memref<64x64xf32, #tpu.memory_space<vmem>>, vector<64x64xf32>
    %cst_10 = arith.constant dense<0.000000e+00> : vector<24x64xf32>
    %14 = tpu.matmul %12, %13, %cst_10 {dimension_numbers = #tpu.dot_dimension_numbers<[1], [0], [0], [1], [0, 0, 1, 1], [], []>} : vector<24x64xf32>, vector<64x64xf32>, vector<24x64xf32> -> vector<24x64xf32>
    %15 = vector.broadcast %4 : vector<1x64xf32> to vector<24x64xf32>
    %16 = arith.addf %14, %15 : vector<24x64xf32>
    %cst_11 = arith.constant 0.000000e+00 : f32
    %17 = vector.broadcast %cst_11 : f32 to vector<24x64xf32>
    %18 = arith.maximumf %16, %17 : vector<24x64xf32>
    %c0_12 = arith.constant 0 : index
    %c0_13 = arith.constant 0 : index
    %19 = vector.load %arg8[%c0_12, %c0_13] : memref<64x32xf32, #tpu.memory_space<vmem>>, vector<64x32xf32>
    %cst_14 = arith.constant dense<0.000000e+00> : vector<24x32xf32>
    %20 = tpu.matmul %18, %19, %cst_14 {dimension_numbers = #tpu.dot_dimension_numbers<[1], [0], [0], [1], [0, 0, 1, 1], [], []>} : vector<24x64xf32>, vector<64x32xf32>, vector<24x32xf32> -> vector<24x32xf32>
    %21 = vector.broadcast %5 : vector<1x32xf32> to vector<24x32xf32>
    %22 = arith.addf %20, %21 : vector<24x32xf32>
    %23 = vector.extract_strided_slice %22 {offsets = [0, 0], sizes = [24, 16], strides = [1, 1]} : vector<24x32xf32> to vector<24x16xf32>
    %24 = vector.extract_strided_slice %2 {offsets = [3, 0], sizes = [1, 16], strides = [1, 1]} : vector<5x64xf32> to vector<1x16xf32>
    %25 = vector.extract_strided_slice %2 {offsets = [4, 0], sizes = [1, 16], strides = [1, 1]} : vector<5x64xf32> to vector<1x16xf32>
    %cst_15 = arith.constant dense<0.000000e+00> : vector<24xf32>
    %26 = vector.multi_reduction <add>, %23, %cst_15 [1] : vector<24x16xf32> to vector<24xf32>
    %27 = vector.shape_cast %26 : vector<24xf32> to vector<24x1xf32>
    %cst_16 = arith.constant 1.600000e+01 : f32
    %28 = vector.broadcast %cst_16 : f32 to vector<24x1xf32>
    %29 = arith.divf %27, %28 : vector<24x1xf32>
    %30 = vector.broadcast %29 : vector<24x1xf32> to vector<24x16xf32>
    %31 = arith.subf %23, %30 : vector<24x16xf32>
    %32 = arith.mulf %31, %31 : vector<24x16xf32>
    %cst_17 = arith.constant dense<0.000000e+00> : vector<24xf32>
    %33 = vector.multi_reduction <add>, %32, %cst_17 [1] : vector<24x16xf32> to vector<24xf32>
    %34 = vector.shape_cast %33 : vector<24xf32> to vector<24x1xf32>
    %cst_18 = arith.constant 1.600000e+01 : f32
    %35 = vector.broadcast %cst_18 : f32 to vector<24x1xf32>
    %36 = arith.divf %34, %35 : vector<24x1xf32>
    %37 = vector.broadcast %29 : vector<24x1xf32> to vector<24x16xf32>
    %38 = arith.subf %23, %37 : vector<24x16xf32>
    %cst_19 = arith.constant 9.99999974E-6 : f32
    %39 = vector.broadcast %cst_19 : f32 to vector<24x1xf32>
    %40 = arith.addf %36, %39 : vector<24x1xf32>
    %41 = math.rsqrt %40 : vector<24x1xf32>
    %42 = vector.broadcast %41 : vector<24x1xf32> to vector<24x16xf32>
    %43 = arith.mulf %38, %42 : vector<24x16xf32>
    %44 = vector.broadcast %24 : vector<1x16xf32> to vector<24x16xf32>
    %45 = arith.mulf %43, %44 : vector<24x16xf32>
    %46 = vector.broadcast %25 : vector<1x16xf32> to vector<24x16xf32>
    %47 = arith.addf %45, %46 : vector<24x16xf32>
    %48 = vector.extract_strided_slice %22 {offsets = [0, 16], sizes = [24, 16], strides = [1, 1]} : vector<24x32xf32> to vector<24x16xf32>
    %49 = vector.extract_strided_slice %2 {offsets = [3, 16], sizes = [1, 16], strides = [1, 1]} : vector<5x64xf32> to vector<1x16xf32>
    %50 = vector.extract_strided_slice %2 {offsets = [4, 16], sizes = [1, 16], strides = [1, 1]} : vector<5x64xf32> to vector<1x16xf32>
    %cst_20 = arith.constant dense<0.000000e+00> : vector<24xf32>
    %51 = vector.multi_reduction <add>, %48, %cst_20 [1] : vector<24x16xf32> to vector<24xf32>
    %52 = vector.shape_cast %51 : vector<24xf32> to vector<24x1xf32>
    %cst_21 = arith.constant 1.600000e+01 : f32
    %53 = vector.broadcast %cst_21 : f32 to vector<24x1xf32>
    %54 = arith.divf %52, %53 : vector<24x1xf32>
    %55 = vector.broadcast %54 : vector<24x1xf32> to vector<24x16xf32>
    %56 = arith.subf %48, %55 : vector<24x16xf32>
    %57 = arith.mulf %56, %56 : vector<24x16xf32>
    %cst_22 = arith.constant dense<0.000000e+00> : vector<24xf32>
    %58 = vector.multi_reduction <add>, %57, %cst_22 [1] : vector<24x16xf32> to vector<24xf32>
    %59 = vector.shape_cast %58 : vector<24xf32> to vector<24x1xf32>
    %cst_23 = arith.constant 1.600000e+01 : f32
    %60 = vector.broadcast %cst_23 : f32 to vector<24x1xf32>
    %61 = arith.divf %59, %60 : vector<24x1xf32>
    %62 = vector.broadcast %54 : vector<24x1xf32> to vector<24x16xf32>
    %63 = arith.subf %48, %62 : vector<24x16xf32>
    %cst_24 = arith.constant 9.99999974E-6 : f32
    %64 = vector.broadcast %cst_24 : f32 to vector<24x1xf32>
    %65 = arith.addf %61, %64 : vector<24x1xf32>
    %66 = math.rsqrt %65 : vector<24x1xf32>
    %67 = vector.broadcast %66 : vector<24x1xf32> to vector<24x16xf32>
    %68 = arith.mulf %63, %67 : vector<24x16xf32>
    %69 = vector.broadcast %49 : vector<1x16xf32> to vector<24x16xf32>
    %70 = arith.mulf %68, %69 : vector<24x16xf32>
    %71 = vector.broadcast %50 : vector<1x16xf32> to vector<24x16xf32>
    %72 = arith.addf %70, %71 : vector<24x16xf32>
    %73 = arith.negf %72 : vector<24x16xf32>
    %74 = math.exp %73 : vector<24x16xf32>
    %cst_25 = arith.constant 1.000000e+00 : f32
    %75 = vector.broadcast %cst_25 : f32 to vector<24x16xf32>
    %76 = arith.addf %75, %74 : vector<24x16xf32>
    %77 = arith.divf %75, %76 : vector<24x16xf32>
    %78 = arith.mulf %47, %77 : vector<24x16xf32>
    %c0_26 = arith.constant 0 : index
    %c0_27 = arith.constant 0 : index
    %79 = vector.load %arg10[%c0_26, %c0_27] : memref<24x16xf32, #tpu.memory_space<vmem>>, vector<24x16xf32>
    tpu.vector_store %arg10[%c0_26, %c0_27], %78 {strides = array<i32>} : memref<24x16xf32, #tpu.memory_space<vmem>>, vector<24x16xf32>,
    return
  }
  func.func @transform_0(%arg0: i32, %arg1: memref<24xi32, #tpu.memory_space<smem>>, %arg2: memref<24xi32, #tpu.memory_space<smem>>, %arg3: memref<16xi32, #tpu.memory_space<smem>>) -> (i32, i32) {
    %c0_i32 = arith.constant 0 : i32
    %c0_i32_0 = arith.constant 0 : i32
    %c0_i32_1 = arith.constant 0 : i32
    return %c0_i32, %c0_i32_0 : i32, i32
  }
  func.func @transform_1(%arg0: i32, %arg1: memref<24xi32, #tpu.memory_space<smem>>, %arg2: memref<24xi32, #tpu.memory_space<smem>>, %arg3: memref<16xi32, #tpu.memory_space<smem>>) -> (i32, i32) {
    %c0_i32 = arith.constant 0 : i32
    %c0_i32_0 = arith.constant 0 : i32
    %c0_i32_1 = arith.constant 0 : i32
    return %c0_i32, %c0_i32_0 : i32, i32
  }
  func.func @transform_2(%arg0: i32, %arg1: memref<24xi32, #tpu.memory_space<smem>>, %arg2: memref<24xi32, #tpu.memory_space<smem>>, %arg3: memref<16xi32, #tpu.memory_space<smem>>) -> (i32, i32) {
    %c0_i32 = arith.constant 0 : i32
    %c0_i32_0 = arith.constant 0 : i32
    %c0_i32_1 = arith.constant 0 : i32
    return %c0_i32, %c0_i32_0 : i32, i32
  }
  func.func @transform_3(%arg0: i32, %arg1: memref<24xi32, #tpu.memory_space<smem>>, %arg2: memref<24xi32, #tpu.memory_space<smem>>, %arg3: memref<16xi32, #tpu.memory_space<smem>>) -> (i32, i32) {
    %c0_i32 = arith.constant 0 : i32
    %c0_i32_0 = arith.constant 0 : i32
    %c0_i32_1 = arith.constant 0 : i32
    return %c0_i32, %c0_i32_0 : i32, i32
  }
  func.func @transform_4(%arg0: i32, %arg1: memref<24xi32, #tpu.memory_space<smem>>, %arg2: memref<24xi32, #tpu.memory_space<smem>>, %arg3: memref<16xi32, #tpu.memory_space<smem>>) -> (i32, i32) {
    %c0_i32 = arith.constant 0 : i32
    %c0_i32_0 = arith.constant 0 : i32
    %c0_i32_1 = arith.constant 0 : i32
    return %c0_i32, %c0_i32_0 : i32, i32
  }
  func.func @transform_5(%arg0: i32, %arg1: memref<24xi32, #tpu.memory_space<smem>>, %arg2: memref<24xi32, #tpu.memory_space<smem>>, %arg3: memref<16xi32, #tpu.memory_space<smem>>) -> (i32, i32) {
    %c0_i32 = arith.constant 0 : i32
    %c0_i32_0 = arith.constant 0 : i32
    %c0_i32_1 = arith.constant 0 : i32
    return %c0_i32, %c0_i32_0 : i32, i32
  }
  func.func @transform_6(%arg0: i32, %arg1: memref<24xi32, #tpu.memory_space<smem>>, %arg2: memref<24xi32, #tpu.memory_space<smem>>, %arg3: memref<16xi32, #tpu.memory_space<smem>>) -> (i32, i32) {
    %c0_i32 = arith.constant 0 : i32
    %c0_i32_0 = arith.constant 0 : i32
    return %arg0, %c0_i32 : i32, i32
  }
}

</mosaic_0001>

<llo_original>
// kernel: tpu_custom_call.1
$region0: #{tpu_custom_call.1}
  #allocation0 [shape = 'u32[]', space=smem, size = 0x4, offset = 0x4, fixed_abs, tag = 'smem constant byte address 0x4 - core index']
  #allocation1 [shape = 'u32[144,128]{1,0:T(1,128)}', space=vmem, size = 0x12000, scoped, tag = 'internal scratch']
  #allocation2 [shape = 'f32[24,40]{1,0:T(8,128)}', space=vmem, size = 0x3000, scoped, tag = 'scratch operand']
  #allocation3 [shape = 's32[1]{0}', space=sflag, size = 0x4, scoped, tag = 'scoped memory for tpu_custom_call.1']
  #allocation4 [shape = 'u8[512]{0}', space=smem, size = 0x200, scoped, tag = 'prefetched SMEM operand 0']
  #allocation5 [shape = 'u8[512]{0}', space=smem, size = 0x200, scoped, tag = 'prefetched SMEM operand 1']
  #allocation6 [shape = 'u8[512]{0}', space=smem, size = 0x200, scoped, tag = 'prefetched SMEM operand 2']
  %s0 = inlined_call_operand.hbm [shape: s32[24], index: 0, kind: input, shape index: {}]
  %s1 = inlined_call_operand.hbm [shape: s32[24], index: 1, kind: input, shape index: {}]
  %s2 = inlined_call_operand.hbm [shape: s32[16], index: 2, kind: input, shape index: {}]
  %s3 = inlined_call_operand.hbm [shape: f32[16,16], index: 3, kind: input, shape index: {}]
  %s4 = inlined_call_operand.vmem [shape: f32[2,8], index: 4, kind: input, shape index: {}]
  %s5 = inlined_call_operand.vmem [shape: f32[40,64], index: 5, kind: input, shape index: {}]
  %s6 = inlined_call_operand.vmem [shape: f32[64,64], index: 6, kind: input, shape index: {}]
  %s7 = inlined_call_operand.vmem [shape: f32[64,32], index: 7, kind: input, shape index: {}]
  %s8 = inlined_call_operand.hbm [shape: f32[5,64], index: 8, kind: input, shape index: {}]
  %s9 = inlined_call_operand.vmem [shape: f32[24,16], index: 9, kind: output, shape index: {}]
  %s10 = sld [smem:[#allocation0]]
  $region49: #{tpu_custom_call.1} parent=0
    _
  %s12 = ssub.s32 1, %s10
  %s13 = scalar_select 0, %s12, %s10
  %15 = dma.hbm_to_smem %s0, 16, [#allocation4], [#allocation3]
  %17 = dma.hbm_to_smem %s1, 16, [#allocation5], [#allocation3]
  %19 = dma.hbm_to_smem %s2, 16, [#allocation6], [#allocation3]
  %20 = dma.done [#allocation3], 48
  %21 = sfence
  $region1: #{tpu_custom_call.1} parent=0
    #allocation7 [shape = 'u8[8192]{0}', space=vmem, size = 0x2000, scoped, tag = 'input window, operand 3, single buffered']
    #allocation8 [shape = 's32[1]{0}', space=sflag, size = 0x4, scoped, tag = 'scoped memory for tpu_custom_call.1']
    #allocation9 [shape = 'u8[4096]{0}', space=vmem, size = 0x1000, scoped, tag = 'input window, operand 8, single buffered']
    #allocation10 [shape = 's32[1]{0}', space=sflag, size = 0x4, scoped, tag = 'scoped memory for tpu_custom_call.1']
    %22 = vsyncpa [#allocation8], 0
    %23 = vsyncpa [#allocation10], 0
    // Predicated region
    $region2: #{tpu_custom_call.1} parent=1 // pred_check
      _
    $region3: #{tpu_custom_call.1} parent=1 // pred_check_branch
      %25 = sbr.rel (0) target = $region5
    $region4: #{tpu_custom_call.1} parent=1 // pred_region
      %s27 = ssub.s32 256, 256
      %28 = vsyncadd [#allocation8], %s27
      %s29 = sshll.u32 [#allocation7], 4
      %s30 = int_to_ptr.vmem [resolvable:$true] %s29
      %35 = dma.hbm_to_vmem [thread:$0]  %s3, 256, %s30, [#allocation8], 128, 128, 8
    $region5: #{tpu_custom_call.1} parent=1 // pred_fallthru
      _
    // Predicated region
    $region6: #{tpu_custom_call.1} parent=1 // pred_check
      _
    $region7: #{tpu_custom_call.1} parent=1 // pred_check_branch
      %37 = sbr.rel (0) target = $region9
    $region8: #{tpu_custom_call.1} parent=1 // pred_region
      _
    $region9: #{tpu_custom_call.1} parent=1 // pred_fallthru
      _
    // Predicated region
    $region10: #{tpu_custom_call.1} parent=1 // pred_check
      _
    $region11: #{tpu_custom_call.1} parent=1 // pred_check_branch
      %39 = sbr.rel (0) target = $region13
    $region12: #{tpu_custom_call.1} parent=1 // pred_region
      _
    $region13: #{tpu_custom_call.1} parent=1 // pred_fallthru
      _
    // Predicated region
    $region14: #{tpu_custom_call.1} parent=1 // pred_check
      _
    $region15: #{tpu_custom_call.1} parent=1 // pred_check_branch
      %41 = sbr.rel (0) target = $region17
    $region16: #{tpu_custom_call.1} parent=1 // pred_region
      _
    $region17: #{tpu_custom_call.1} parent=1 // pred_fallthru
      _
    // Predicated region
    $region18: #{tpu_custom_call.1} parent=1 // pred_check
      _
    $region19: #{tpu_custom_call.1} parent=1 // pred_check_branch
      %43 = sbr.rel (0) target = $region21
    $region20: #{tpu_custom_call.1} parent=1 // pred_region
      _
    $region21: #{tpu_custom_call.1} parent=1 // pred_fallthru
      _
    // Predicated region
    $region22: #{tpu_custom_call.1} parent=1 // pred_check
      _
    $region23: #{tpu_custom_call.1} parent=1 // pred_check_branch
      %45 = sbr.rel (0) target = $region25
    $region24: #{tpu_custom_call.1} parent=1 // pred_region
      %s47 = ssub.s32 128, 128
      %48 = vsyncadd [#allocation10], %s47
      %s50 = sshll.u32 [#allocation9], 4
      %s51 = int_to_ptr.vmem [resolvable:$true] %s50
      %53 = dma.hbm_to_vmem [thread:$0]  %s8, 128, %s51, [#allocation10]
    $region25: #{tpu_custom_call.1} parent=1 // pred_fallthru
      _
    // Predicated region
    $region26: #{tpu_custom_call.1} parent=1 // pred_check
      _
    $region27: #{tpu_custom_call.1} parent=1 // pred_check_branch
      %55 = sbr.rel (0) target = $region29
    $region28: #{tpu_custom_call.1} parent=1 // pred_region
      %56 = dma.done [#allocation8], 256
    $region29: #{tpu_custom_call.1} parent=1 // pred_fallthru
      _
    // Predicated region
    $region30: #{tpu_custom_call.1} parent=1 // pred_check
      _
    $region31: #{tpu_custom_call.1} parent=1 // pred_check_branch
      %58 = sbr.rel (0) target = $region33
    $region32: #{tpu_custom_call.1} parent=1 // pred_region
      %59 = dma.done [#allocation10], 128
    $region33: #{tpu_custom_call.1} parent=1 // pred_fallthru
      _
    %s60 = smul.u32 0, 24
    loop: start=0, step=1, limit=24
    $region34: #{tpu_custom_call.1} parent=1 // loop_pre_header
      _
    $region35: #{tpu_custom_call.1} parent=1 // loop_header
      %s62 = sphi 0, %s66
      %p63 = scmp.ge.s32.totalorder %s62, 24
    $region36: #{tpu_custom_call.1} parent=1 // loop_header_branch
      %65 = sbr.rel (%p63) target = $region40
    $region37: #{tpu_custom_call.1} parent=1 // loop_body
      %s67 = sadd.s32 %s60, %s62
      %s68 = sld [smem:[#allocation4 + %s67]]
      %s69 = sld [smem:[#allocation5 + %s67]]
      %s70 = sld [smem:[#allocation6 + %s68]]
      %s71 = scalar_lea.vmem [#allocation7], %s68
      %v72 = vld [vmem:[%s71] sm:$0x1]
      %s73 = scalar_lea.vmem [#allocation2], %s62
      %vm74 = vcmask 122880
      %75 = vst.msk [vmem:[%s73] sm:$0x1] %vm74, %v72
      %s76 = scalar_lea.vmem [#allocation7], %s69
      %v77 = vld [vmem:[%s76] sm:$0x1]
      %79 = vrot.lane.b32.xlu0 %v77, 16
      %v80 = vpop.permute.xlu0 %79
      %vm82 = vcmask 254080
      %83 = vst.msk [vmem:[%s73] sm:$0x1] %vm82, %v80
      %s84 = scalar_lea.vmem %s4, %s70
      %v85 = vld [vmem:[%s84] sm:$0x1]
      %87 = vrot.lane.b32.xlu0 %v85, 32
      %v88 = vpop.permute.xlu0 %87
      %vm90 = vcmask 319744
      %91 = vst.msk [vmem:[%s73] sm:$0x1] %vm90, %v88
    $region38: #{tpu_custom_call.1} parent=1 // loop_footer
      %s66 = sadd.s32 1, %s62
    $region39: #{tpu_custom_call.1} parent=1 // loop_footer_branch
      %61 = sbr.rel target = $region35
    $region40: #{tpu_custom_call.1} parent=1 // loop_exit
      _
    %v92 = vld [vmem:[#allocation9] sm:$0x1f]
    %v93 = vld [vmem:[#allocation2] sm:$0xff]
    %v94 = vld [vmem:[#allocation2 + $0x8] sm:$0xff]
    %v95 = vld [vmem:[#allocation2 + $0x10] sm:$0xff]
    %v96 = vld [vmem:[%s5] sm:$0xff]
    %v97 = vld [vmem:[%s5 + $0x8] sm:$0xff]
    %v98 = vld [vmem:[%s5 + $0x10] sm:$0xff]
    %v99 = vld [vmem:[%s5 + $0x18] sm:$0xff]
    %v100 = vld [vmem:[%s5 + $0x20] sm:$0xff]
    %v101 = vlaneseq
    %v102 = vshrl.u32 %v101, 7
    %v103 = vsub.s32 0, %v102
    %v104 = vrot.slane %v92, %v103
    %vm105 = vcmask 326656
    %v107 = vsel %vm105, %v93, 0
    %v110 = vsel %vm105, %v94, 0
    %v113 = vsel %vm105, %v95, 0
    %115 = vmatprep.subr.mxu0 0.0
    %116 = vmatpush1.msra.mxu0 0.0
    %117 = vmatprep.subr.mxu0 0.0
    %118 = vmatpush1.msra.mxu0 0.0
    %119 = vmatprep.subr.mxu0 0.0
    %120 = vmatpush1.msra.mxu0 0.0
    %121 = vmatprep.subr.mxu0 0.0
    %122 = vmatpush1.msra.mxu0 0.0
    %123 = vmatprep.subr.mxu0 0.0
    %124 = vmatpush1.msra.mxu0 0.0
    %125 = vmatprep.subr.mxu0 0.0
    %126 = vmatpush1.msra.mxu0 0.0
    %127 = vmatprep.subr.mxu0 0.0
    %128 = vmatpush1.msra.mxu0 0.0
    %129 = vmatprep.subr.mxu0 0.0
    %130 = vmatpush1.msra.mxu0 0.0
    %131 = vmatprep.subr.mxu0 0.0
    %132 = vmatpush1.msra.mxu0 0.0
    %133 = vmatprep.subr.mxu0 0.0
    %134 = vmatpush1.msra.mxu0 0.0
    %135 = vmatprep.subr.mxu0 0.0
    %136 = vmatpush1.msra.mxu0 0.0
    %137 = vmatprep.subr.mxu0 0.0
    %138 = vmatpush1.msra.mxu0 %v100
    %139 = vmatprep.subr.mxu0 0.0
    %140 = vmatpush1.msra.mxu0 %v99
    %141 = vmatprep.subr.mxu0 0.0
    %142 = vmatpush1.msra.mxu0 %v98
    %143 = vmatprep.subr.mxu0 0.0
    %144 = vmatpush1.msra.mxu0 %v97
    %145 = vmatprep.subr.mxu0 0.0
    %146 = vmatpush1.msra.mxu0 %v96
    %147 = vmatprep.subr.mxu0 0.0
    %148 = vmatpush2.msra.mxu0 0.0
    %149 = vmatprep.subr.mxu0 0.0
    %150 = vmatpush2.msra.mxu0 0.0
    %151 = vmatprep.subr.mxu0 0.0
    %152 = vmatpush2.msra.mxu0 0.0
    %153 = vmatprep.subr.mxu0 0.0
    %154 = vmatpush2.msra.mxu0 0.0
    %155 = vmatprep.subr.mxu0 0.0
    %156 = vmatpush2.msra.mxu0 0.0
    %157 = vmatprep.subr.mxu0 0.0
    %158 = vmatpush2.msra.mxu0 0.0
    %159 = vmatprep.subr.mxu0 0.0
    %160 = vmatpush2.msra.mxu0 0.0
    %161 = vmatprep.subr.mxu0 0.0
    %162 = vmatpush2.msra.mxu0 0.0
    %163 = vmatprep.subr.mxu0 0.0
    %164 = vmatpush2.msra.mxu0 0.0
    %165 = vmatprep.subr.mxu0 0.0
    %166 = vmatpush2.msra.mxu0 0.0
    %167 = vmatprep.subr.mxu0 0.0
    %168 = vmatpush2.msra.mxu0 0.0
    %169 = vmatprep.subr.mxu0 0.0
    %170 = vmatpush2.msra.mxu0 0.0
    %171 = vmatprep.subr.mxu0 0.0
    %172 = vmatpush2.msra.mxu0 0.0
    %173 = vmatprep.subr.mxu0 0.0
    %174 = vmatpush2.msra.mxu0 0.0
    %175 = vmatprep.subr.mxu0 0.0
    %176 = vmatpush2.msra.mxu0 0.0
    %177 = vmatprep.subr.mxu0 0.0
    %178 = vmatpush2.msra.mxu0 0.0
    %179 = vmatprep.mubr.f32.mxu0 0.0
    %180 = vmatmul.mubr.f32.gmra.mxu0 %v107
    %v181 = vpop.f32.mrf.mxu0
    %v182 = vadd.f32 %v104, %v181
    %v183 = vpop.f32.mrf.mxu0
    %184 = vmatprep.mubr.f32.mxu0 0.0
    %185 = vmatmul.mubr.f32.gmra.mxu0 %v110
    %v186 = vpop.f32.mrf.mxu0
    %v187 = vadd.f32 %v104, %v186
    %v188 = vpop.f32.mrf.mxu0
    %189 = vmatprep.mubr.f32.mxu0 0.0
    %190 = vmatmul.mubr.f32.gmra.mxu0 %v113
    %v191 = vpop.f32.mrf.mxu0
    %v192 = vadd.f32 %v104, %v191
    %v193 = vpop.f32.mrf.mxu0
    %194 = vdwg.mxu0
    %v195 = vmax.f32 %v182, 0.0
    %v196 = vmax.f32 %v187, 0.0
    %v197 = vmax.f32 %v192, 0.0
    %v198 = vld [vmem:[%s6] sm:$0xff]
    %v199 = vld [vmem:[%s6 + $0x8] sm:$0xff]
    %v200 = vld [vmem:[%s6 + $0x10] sm:$0xff]
    %v201 = vld [vmem:[%s6 + $0x18] sm:$0xff]
    %v202 = vld [vmem:[%s6 + $0x20] sm:$0xff]
    %v203 = vld [vmem:[%s6 + $0x28] sm:$0xff]
    %v204 = vld [vmem:[%s6 + $0x30] sm:$0xff]
    %v205 = vld [vmem:[%s6 + $0x38] sm:$0xff]
    %v206 = vlaneseq
    %v207 = vshrl.u32 %v206, 7
    %v208 = vsub.s32 1, %v207
    %v209 = vrot.slane %v92, %v208
    %vm210 = vcmask 523264
    %v212 = vsel %vm210, %v195, 0
    %v215 = vsel %vm210, %v196, 0
    %v218 = vsel %vm210, %v197, 0
    %220 = vmatprep.subr.mxu0 0.0
    %221 = vmatpush1.msra.mxu0 0.0
    %222 = vmatprep.subr.mxu0 0.0
    %223 = vmatpush1.msra.mxu0 0.0
    %224 = vmatprep.subr.mxu0 0.0
    %225 = vmatpush1.msra.mxu0 0.0
    %226 = vmatprep.subr.mxu0 0.0
    %227 = vmatpush1.msra.mxu0 0.0
    %228 = vmatprep.subr.mxu0 0.0
    %229 = vmatpush1.msra.mxu0 0.0
    %230 = vmatprep.subr.mxu0 0.0
    %231 = vmatpush1.msra.mxu0 0.0
    %232 = vmatprep.subr.mxu0 0.0
    %233 = vmatpush1.msra.mxu0 0.0
    %234 = vmatprep.subr.mxu0 0.0
    %235 = vmatpush1.msra.mxu0 0.0
    %236 = vmatprep.subr.mxu0 0.0
    %237 = vmatpush1.msra.mxu0 %v205
    %238 = vmatprep.subr.mxu0 0.0
    %239 = vmatpush1.msra.mxu0 %v204
    %240 = vmatprep.subr.mxu0 0.0
    %241 = vmatpush1.msra.mxu0 %v203
    %242 = vmatprep.subr.mxu0 0.0
    %243 = vmatpush1.msra.mxu0 %v202
    %244 = vmatprep.subr.mxu0 0.0
    %245 = vmatpush1.msra.mxu0 %v201
    %246 = vmatprep.subr.mxu0 0.0
    %247 = vmatpush1.msra.mxu0 %v200
    %248 = vmatprep.subr.mxu0 0.0
    %249 = vmatpush1.msra.mxu0 %v199
    %250 = vmatprep.subr.mxu0 0.0
    %251 = vmatpush1.msra.mxu0 %v198
    %252 = vmatprep.subr.mxu0 0.0
    %253 = vmatpush2.msra.mxu0 0.0
    %254 = vmatprep.subr.mxu0 0.0
    %255 = vmatpush2.msra.mxu0 0.0
    %256 = vmatprep.subr.mxu0 0.0
    %257 = vmatpush2.msra.mxu0 0.0
    %258 = vmatprep.subr.mxu0 0.0
    %259 = vmatpush2.msra.mxu0 0.0
    %260 = vmatprep.subr.mxu0 0.0
    %261 = vmatpush2.msra.mxu0 0.0
    %262 = vmatprep.subr.mxu0 0.0
    %263 = vmatpush2.msra.mxu0 0.0
    %264 = vmatprep.subr.mxu0 0.0
    %265 = vmatpush2.msra.mxu0 0.0
    %266 = vmatprep.subr.mxu0 0.0
    %267 = vmatpush2.msra.mxu0 0.0
    %268 = vmatprep.subr.mxu0 0.0
    %269 = vmatpush2.msra.mxu0 0.0
    %270 = vmatprep.subr.mxu0 0.0
    %271 = vmatpush2.msra.mxu0 0.0
    %272 = vmatprep.subr.mxu0 0.0
    %273 = vmatpush2.msra.mxu0 0.0
    %274 = vmatprep.subr.mxu0 0.0
    %275 = vmatpush2.msra.mxu0 0.0
    %276 = vmatprep.subr.mxu0 0.0
    %277 = vmatpush2.msra.mxu0 0.0
    %278 = vmatprep.subr.mxu0 0.0
    %279 = vmatpush2.msra.mxu0 0.0
    %280 = vmatprep.subr.mxu0 0.0
    %281 = vmatpush2.msra.mxu0 0.0
    %282 = vmatprep.subr.mxu0 0.0
    %283 = vmatpush2.msra.mxu0 0.0
    %284 = vmatprep.mubr.f32.mxu0 0.0
    %285 = vmatmul.mubr.f32.gmra.mxu0 %v212
    %v286 = vpop.f32.mrf.mxu0
    %v287 = vadd.f32 %v209, %v286
    %v288 = vpop.f32.mrf.mxu0
    %289 = vmatprep.mubr.f32.mxu0 0.0
    %290 = vmatmul.mubr.f32.gmra.mxu0 %v215
    %v291 = vpop.f32.mrf.mxu0
    %v292 = vadd.f32 %v209, %v291
    %v293 = vpop.f32.mrf.mxu0
    %294 = vmatprep.mubr.f32.mxu0 0.0
    %295 = vmatmul.mubr.f32.gmra.mxu0 %v218
    %v296 = vpop.f32.mrf.mxu0
    %v297 = vadd.f32 %v209, %v296
    %v298 = vpop.f32.mrf.mxu0
    %299 = vdwg.mxu0
    %v300 = vmax.f32 %v287, 0.0
    %v301 = vmax.f32 %v292, 0.0
    %v302 = vmax.f32 %v297, 0.0
    %v303 = vld [vmem:[%s7] sm:$0xff]
    %v304 = vld [vmem:[%s7 + $0x8] sm:$0xff]
    %v305 = vld [vmem:[%s7 + $0x10] sm:$0xff]
    %v306 = vld [vmem:[%s7 + $0x18] sm:$0xff]
    %v307 = vld [vmem:[%s7 + $0x20] sm:$0xff]
    %v308 = vld [vmem:[%s7 + $0x28] sm:$0xff]
    %v309 = vld [vmem:[%s7 + $0x30] sm:$0xff]
    %v310 = vld [vmem:[%s7 + $0x38] sm:$0xff]
    %v311 = vlaneseq
    %v312 = vshrl.u32 %v311, 7
    %v313 = vsub.s32 2, %v312
    %v314 = vrot.slane %v92, %v313
    %v316 = vsel %vm210, %v300, 0
    %v319 = vsel %vm210, %v301, 0
    %v322 = vsel %vm210, %v302, 0
    %324 = vmatprep.subr.mxu0 0.0
    %325 = vmatpush1.msra.mxu0 0.0
    %326 = vmatprep.subr.mxu0 0.0
    %327 = vmatpush1.msra.mxu0 0.0
    %328 = vmatprep.subr.mxu0 0.0
    %329 = vmatpush1.msra.mxu0 0.0
    %330 = vmatprep.subr.mxu0 0.0
    %331 = vmatpush1.msra.mxu0 0.0
    %332 = vmatprep.subr.mxu0 0.0
    %333 = vmatpush1.msra.mxu0 0.0
    %334 = vmatprep.subr.mxu0 0.0
    %335 = vmatpush1.msra.mxu0 0.0
    %336 = vmatprep.subr.mxu0 0.0
    %337 = vmatpush1.msra.mxu0 0.0
    %338 = vmatprep.subr.mxu0 0.0
    %339 = vmatpush1.msra.mxu0 0.0
    %340 = vmatprep.subr.mxu0 0.0
    %341 = vmatpush1.msra.mxu0 %v310
    %342 = vmatprep.subr.mxu0 0.0
    %343 = vmatpush1.msra.mxu0 %v309
    %344 = vmatprep.subr.mxu0 0.0
    %345 = vmatpush1.msra.mxu0 %v308
    %346 = vmatprep.subr.mxu0 0.0
    %347 = vmatpush1.msra.mxu0 %v307
    %348 = vmatprep.subr.mxu0 0.0
    %349 = vmatpush1.msra.mxu0 %v306
    %350 = vmatprep.subr.mxu0 0.0
    %351 = vmatpush1.msra.mxu0 %v305
    %352 = vmatprep.subr.mxu0 0.0
    %353 = vmatpush1.msra.mxu0 %v304
    %354 = vmatprep.subr.mxu0 0.0
    %355 = vmatpush1.msra.mxu0 %v303
    %356 = vmatprep.subr.mxu0 0.0
    %357 = vmatpush2.msra.mxu0 0.0
    %358 = vmatprep.subr.mxu0 0.0
    %359 = vmatpush2.msra.mxu0 0.0
    %360 = vmatprep.subr.mxu0 0.0
    %361 = vmatpush2.msra.mxu0 0.0
    %362 = vmatprep.subr.mxu0 0.0
    %363 = vmatpush2.msra.mxu0 0.0
    %364 = vmatprep.subr.mxu0 0.0
    %365 = vmatpush2.msra.mxu0 0.0
    %366 = vmatprep.subr.mxu0 0.0
    %367 = vmatpush2.msra.mxu0 0.0
    %368 = vmatprep.subr.mxu0 0.0
    %369 = vmatpush2.msra.mxu0 0.0
    %370 = vmatprep.subr.mxu0 0.0
    %371 = vmatpush2.msra.mxu0 0.0
    %372 = vmatprep.subr.mxu0 0.0
    %373 = vmatpush2.msra.mxu0 0.0
    %374 = vmatprep.subr.mxu0 0.0
    %375 = vmatpush2.msra.mxu0 0.0
    %376 = vmatprep.subr.mxu0 0.0
    %377 = vmatpush2.msra.mxu0 0.0
    %378 = vmatprep.subr.mxu0 0.0
    %379 = vmatpush2.msra.mxu0 0.0
    %380 = vmatprep.subr.mxu0 0.0
    %381 = vmatpush2.msra.mxu0 0.0
    %382 = vmatprep.subr.mxu0 0.0
    %383 = vmatpush2.msra.mxu0 0.0
    %384 = vmatprep.subr.mxu0 0.0
    %385 = vmatpush2.msra.mxu0 0.0
    %386 = vmatprep.subr.mxu0 0.0
    %387 = vmatpush2.msra.mxu0 0.0
    %388 = vmatprep.mubr.f32.mxu0 0.0
    %389 = vmatmul.mubr.f32.gmra.mxu0 %v316
    %v390 = vpop.f32.mrf.mxu0
    %v391 = vadd.f32 %v314, %v390
    %v392 = vpop.f32.mrf.mxu0
    %393 = vmatprep.mubr.f32.mxu0 0.0
    %394 = vmatmul.mubr.f32.gmra.mxu0 %v319
    %v395 = vpop.f32.mrf.mxu0
    %v396 = vadd.f32 %v314, %v395
    %v397 = vpop.f32.mrf.mxu0
    %398 = vmatprep.mubr.f32.mxu0 0.0
    %399 = vmatmul.mubr.f32.gmra.mxu0 %v322
    %v400 = vpop.f32.mrf.mxu0
    %v401 = vadd.f32 %v314, %v400
    %v402 = vpop.f32.mrf.mxu0
    %403 = vdwg.mxu0
    %vm404 = vcmask 130048
    %v405 = vsel %vm404, %v391, 0.0
    %406 = vadd.xlane.f32.xlu0 %v405
    %v407 = vpop.xlane.xlu0 %406
    %v408 = vsel %vm404, %v396, 0.0
    %409 = vadd.xlane.f32.xlu0 %v408
    %v410 = vpop.xlane.xlu0 %409
    %v411 = vsel %vm404, %v401, 0.0
    %412 = vadd.xlane.f32.xlu0 %v411
    %v413 = vpop.xlane.xlu0 %412
    %v414 = vrcp.pop 16.0
    %v415 = vmul.f32 %v407, %v414
    %v416 = vmul.f32 %v410, %v414
    %v417 = vmul.f32 %v413, %v414
    %v418 = vsub.f32 %v391, %v415
    %v419 = vsub.f32 %v396, %v416
    %v420 = vsub.f32 %v401, %v417
    %v421 = vmul.f32 %v418, %v418
    %v422 = vmul.f32 %v419, %v419
    %v423 = vmul.f32 %v420, %v420
    %v424 = vsel %vm404, %v421, 0.0
    %425 = vadd.xlane.f32.xlu0 %v424
    %v426 = vpop.xlane.xlu0 %425
    %v427 = vsel %vm404, %v422, 0.0
    %428 = vadd.xlane.f32.xlu0 %v427
    %v429 = vpop.xlane.xlu0 %428
    %v430 = vsel %vm404, %v423, 0.0
    %431 = vadd.xlane.f32.xlu0 %v430
    %v432 = vpop.xlane.xlu0 %431
    %v433 = vmul.f32 %v426, %v414
    %v434 = vmul.f32 %v429, %v414
    %v435 = vmul.f32 %v432, %v414
    %v436 = vadd.f32 %v433, 1e-05
    %v437 = vadd.f32 %v434, 1e-05
    %v438 = vadd.f32 %v435, 1e-05
    %v439 = vrsqrt.pop %v436
    %v440 = vrsqrt.pop %v437
    %v441 = vrsqrt.pop %v438
    %v442 = vmul.f32 %v418, %v439
    %v443 = vmul.f32 %v419, %v440
    %v444 = vmul.f32 %v420, %v441
    %v445 = vlaneseq
    %v446 = vshrl.u32 %v445, 7
    %v447 = vsub.s32 3, %v446
    %v448 = vrot.slane %v92, %v447
    %v449 = vmul.f32 %v442, %v448
    %v450 = vmul.f32 %v443, %v448
    %v451 = vmul.f32 %v444, %v448
    %v452 = vlaneseq
    %v453 = vshrl.u32 %v452, 7
    %v454 = vsub.s32 4, %v453
    %v455 = vrot.slane %v92, %v454
    %v456 = vadd.f32 %v449, %v455
    %v457 = vadd.f32 %v450, %v455
    %v458 = vadd.f32 %v451, %v455
    %462 = vrot.lane.b32.xlu0 %v391, 112
    %v463 = vpop.permute.xlu0 %462
    %464 = vrot.lane.b32.xlu0 %v396, 112
    %v465 = vpop.permute.xlu0 %464
    %466 = vrot.lane.b32.xlu0 %v401, 112
    %v467 = vpop.permute.xlu0 %466
    %v471 = vsel %vm404, %v463, 0.0
    %472 = vadd.xlane.f32.xlu0 %v471
    %v473 = vpop.xlane.xlu0 %472
    %v474 = vsel %vm404, %v465, 0.0
    %475 = vadd.xlane.f32.xlu0 %v474
    %v476 = vpop.xlane.xlu0 %475
    %v477 = vsel %vm404, %v467, 0.0
    %478 = vadd.xlane.f32.xlu0 %v477
    %v479 = vpop.xlane.xlu0 %478
    %v480 = vmul.f32 %v473, %v414
    %v481 = vmul.f32 %v476, %v414
    %v482 = vmul.f32 %v479, %v414
    %v483 = vsub.f32 %v391, %v480
    %v484 = vsub.f32 %v396, %v481
    %v485 = vsub.f32 %v401, %v482
    %v486 = vmul.f32 %v483, %v483
    %v487 = vmul.f32 %v484, %v484
    %v488 = vmul.f32 %v485, %v485
    %492 = vrot.lane.b32.xlu0 %v486, 112
    %v493 = vpop.permute.xlu0 %492
    %494 = vrot.lane.b32.xlu0 %v487, 112
    %v495 = vpop.permute.xlu0 %494
    %496 = vrot.lane.b32.xlu0 %v488, 112
    %v497 = vpop.permute.xlu0 %496
    %v501 = vsel %vm404, %v493, 0.0
    %502 = vadd.xlane.f32.xlu0 %v501
    %v503 = vpop.xlane.xlu0 %502
    %v504 = vsel %vm404, %v495, 0.0
    %505 = vadd.xlane.f32.xlu0 %v504
    %v506 = vpop.xlane.xlu0 %505
    %v507 = vsel %vm404, %v497, 0.0
    %508 = vadd.xlane.f32.xlu0 %v507
    %v509 = vpop.xlane.xlu0 %508
    %v510 = vmul.f32 %v503, %v414
    %v511 = vmul.f32 %v506, %v414
    %v512 = vmul.f32 %v509, %v414
    %v513 = vadd.f32 %v510, 1e-05
    %v514 = vadd.f32 %v511, 1e-05
    %v515 = vadd.f32 %v512, 1e-05
    %v516 = vrsqrt.pop %v513
    %v517 = vrsqrt.pop %v514
    %v518 = vrsqrt.pop %v515
    %v519 = vmul.f32 %v483, %v516
    %v520 = vmul.f32 %v484, %v517
    %v521 = vmul.f32 %v485, %v518
    %v522 = vmul.f32 %v519, %v448
    %v523 = vmul.f32 %v520, %v448
    %v524 = vmul.f32 %v521, %v448
    %v525 = vadd.f32 %v522, %v455
    %v526 = vadd.f32 %v523, %v455
    %v527 = vadd.f32 %v524, %v455
    %v528 = vxor.u32 %v525, 2147483648
    %v529 = vxor.u32 %v526, 2147483648
    %v530 = vxor.u32 %v527, 2147483648
    %v531 = vmul.f32 %v528, 1.442695
    %v532 = vpow.pop %v531
    %v533 = vmul.f32 %v529, 1.442695
    %v534 = vpow.pop %v533
    %v535 = vmul.f32 %v530, 1.442695
    %v536 = vpow.pop %v535
    %v537 = vadd.f32 %v532, 1.0
    %v538 = vadd.f32 %v534, 1.0
    %v539 = vadd.f32 %v536, 1.0
    %v540 = vrcp.pop %v537
    %v541 = vmul.f32 1.0, %v540
    %v542 = vrcp.pop %v538
    %v543 = vmul.f32 1.0, %v542
    %v544 = vrcp.pop %v539
    %v545 = vmul.f32 1.0, %v544
    %549 = vrot.lane.b32.xlu0 %v541, 112
    %v550 = vpop.permute.xlu0 %549
    %551 = vrot.lane.b32.xlu0 %v543, 112
    %v552 = vpop.permute.xlu0 %551
    %553 = vrot.lane.b32.xlu0 %v545, 112
    %v554 = vpop.permute.xlu0 %553
    %v558 = vmul.f32 %v456, %v550
    %v559 = vmul.f32 %v457, %v552
    %v560 = vmul.f32 %v458, %v554
    %561 = vst.msk [vmem:[%s9] sm:$0xff] %vm404, %v558
    %562 = vst.msk [vmem:[%s9 + $0x8] sm:$0xff] %vm404, %v559
    %563 = vst.msk [vmem:[%s9 + $0x10] sm:$0xff] %vm404, %v560
    // Predicated region
    $region41: #{tpu_custom_call.1} parent=1 // pred_check
      _
    $region42: #{tpu_custom_call.1} parent=1 // pred_check_branch
      %565 = sbr.rel (0) target = $region44
    $region43: #{tpu_custom_call.1} parent=1 // pred_region
      _
    $region44: #{tpu_custom_call.1} parent=1 // pred_fallthru
      _
    // Predicated region
    $region45: #{tpu_custom_call.1} parent=1 // pred_check
      _
    $region46: #{tpu_custom_call.1} parent=1 // pred_check_branch
      %567 = sbr.rel (0) target = $region48
    $region47: #{tpu_custom_call.1} parent=1 // pred_region
      _
    $region48: #{tpu_custom_call.1} parent=1 // pred_fallthru
      _
    %568 = vsyncpa [#allocation8], 1
    %569 = vsyncpa [#allocation10], 1

</llo_original>
